<compile_context>
chip_gen: v7x
topology: tpu7x:2x2x1
jax: 0.10.0
libtpu: 0.0.40
codegen_flags: <defaults>
</compile_context>

<pallas_src>
import functools
import math

import jax
import jax.numpy as jnp
from jax.experimental import pallas as pl
from jax.experimental.pallas import tpu as pltpu

# ----------------------------- configuration --------------------------------
N_IMGS = 2          # batch
C_IN = 3            # image channels
IMG_H = IMG_W = 32  # image spatial size (transform performs no resize here)
C_FEAT = 32         # backbone feature channels
STRIDE = 2          # backbone downsampling factor
A = 3               # anchors per feature location
ANCHOR_SCALES = (8.0, 16.0, 24.0)
PRE_NMS_TOPK = 16   # proposals kept per image
POOL = 4            # ROI pooling output size
HIDDEN = 64         # box-head MLP width
NUM_CLASSES = 3     # background + 2 classes (ele / nee)
LANE = 128          # TPU lane width (lane-dense output padding)
BBOX_XFORM_CLIP = math.log(1000.0 / 16.0)   # torchvision dw/dh clamp

_VMEM = pl.BlockSpec(memory_space=pltpu.MemorySpace.VMEM)


# ------------------------------ Pallas kernels -------------------------------
def _matmul_bias_kernel(x_ref, w_ref, b_ref, o_ref, *, relu):
    acc = jnp.dot(x_ref[...], w_ref[...], preferred_element_type=jnp.float32)
    acc = acc + b_ref[...]
    if relu:
        acc = jnp.maximum(acc, 0.0)
    o_ref[...] = acc.astype(o_ref.dtype)


def matmul_bias(x, w, b, relu=False, out_dtype=jnp.float32, tm=128):
    """bf16 (or f32) inputs, f32 MXU accumulation.  M is tiled with tm=128 and
    marked 'parallel' so v7x's 2 TensorCores split the rows."""
    m, k = x.shape
    k2, n = w.shape
    assert k == k2
    b2 = b.reshape(1, n).astype(jnp.float32)
    kern = functools.partial(_matmul_bias_kernel, relu=relu)
    if m > tm and m % tm == 0:
        return pl.pallas_call(
            kern,
            out_shape=jax.ShapeDtypeStruct((m, n), out_dtype),
            grid=(m // tm,),
            in_specs=[pl.BlockSpec((tm, k), lambda i: (i, 0)),
                      pl.BlockSpec((k, n), lambda i: (0, 0)),
                      pl.BlockSpec((1, n), lambda i: (0, 0))],
            out_specs=pl.BlockSpec((tm, n), lambda i: (i, 0)),
            compiler_params=pltpu.CompilerParams(dimension_semantics=("parallel",)),
        )(x, w, b2)
    return pl.pallas_call(
        kern,
        out_shape=jax.ShapeDtypeStruct((m, n), out_dtype),
        in_specs=[_VMEM, _VMEM, _VMEM],
        out_specs=_VMEM,
    )(x, w, b2)


def _rpn_head_kernel(cols_ref, w_ref, b_ref, wo_ref, bo_ref, o_ref, *, n_obj):
    # conv3x3 (as matmul on im2col patches) + ReLU -> rpn_feat stays in vregs
    feat = jnp.dot(cols_ref[...], w_ref[...], preferred_element_type=jnp.float32)
    feat = jnp.maximum(feat + b_ref[...], 0.0)
    # objectness + anchor deltas in one lane-dense 128-wide matmul
    out = jnp.dot(feat.astype(wo_ref.dtype), wo_ref[...],
                  preferred_element_type=jnp.float32) + bo_ref[...]
    col = jax.lax.broadcasted_iota(jnp.int32, out.shape, 1)
    sig = 1.0 / (1.0 + jnp.exp(-out))              # EUP exp; objectness scores
    o_ref[...] = jnp.where(col < n_obj, sig, out)


def rpn_head(cols, rpn_w, rpn_b, out_w, out_b, tm=128):
    m, k = cols.shape
    c_mid = rpn_w.shape[1]
    n_out = out_w.shape[1]
    assert m % tm == 0
    return pl.pallas_call(
        functools.partial(_rpn_head_kernel, n_obj=A),
        out_shape=jax.ShapeDtypeStruct((m, n_out), jnp.float32),
        grid=(m // tm,),
        in_specs=[pl.BlockSpec((tm, k), lambda i: (i, 0)),
                  pl.BlockSpec((k, c_mid), lambda i: (0, 0)),
                  pl.BlockSpec((1, c_mid), lambda i: (0, 0)),
                  pl.BlockSpec((c_mid, n_out), lambda i: (0, 0)),
                  pl.BlockSpec((1, n_out), lambda i: (0, 0))],
        out_specs=pl.BlockSpec((tm, n_out), lambda i: (i, 0)),
        compiler_params=pltpu.CompilerParams(dimension_semantics=("parallel",)),
    )(cols, rpn_w, rpn_b.reshape(1, c_mid).astype(jnp.float32),
      out_w, out_b.reshape(1, n_out).astype(jnp.float32))


def _roi_head_kernel(x_ref, w1_ref, b1_ref, w2_ref, b2_ref, wo_ref, bo_ref, o_ref):
    # fc1 -> ReLU -> fc2 -> ReLU -> [cls logits | box regression] -> softmax,
    # all resident in VMEM/vregs: one launch for the whole batch of proposals.
    h1 = jnp.dot(x_ref[...], w1_ref[...], preferred_element_type=jnp.float32)
    h1 = jnp.maximum(h1 + b1_ref[...], 0.0)
    h2 = jnp.dot(h1.astype(w2_ref.dtype), w2_ref[...], preferred_element_type=jnp.float32)
    h2 = jnp.maximum(h2 + b2_ref[...], 0.0)
    out = jnp.dot(h2.astype(wo_ref.dtype), wo_ref[...],
                  preferred_element_type=jnp.float32) + bo_ref[...]
    col = jax.lax.broadcasted_iota(jnp.int32, out.shape, 1)
    cls_mask = col < NUM_CLASSES
    masked = jnp.where(cls_mask, out, -1e30)           # padded lanes -> exp()==0
    mx = jnp.max(masked, axis=-1, keepdims=True)
    e = jnp.exp(masked - mx)
    s = jnp.sum(e, axis=-1, keepdims=True)
    probs = e * pl.reciprocal(s, approx=True)
    # cols [0:3] = class probabilities, [3:15] = per-class box regression
    o_ref[...] = jnp.where(cls_mask, probs, out)


def roi_head(flat, p):
    r = flat.shape[0]
    return pl.pallas_call(
        _roi_head_kernel,
        out_shape=jax.ShapeDtypeStruct((r, LANE), jnp.float32),
        in_specs=[_VMEM] * 7,
        out_specs=_VMEM,
    )(flat,
      p["fc1_w"], p["fc1_b"].reshape(1, -1).astype(jnp.float32),
      p["fc2_w"], p["fc2_b"].reshape(1, -1).astype(jnp.float32),
      p["head_out_w"], p["head_out_b"].reshape(1, -1).astype(jnp.float32))


def _box_decode_kernel(s_ref, o_ref, *, img_h, img_w, wx, wy, ww, wh):
    # coordinate-major lane-dense layout: rows 0-3 = box x1,y1,x2,y2;
    # rows 4-7 = deltas dx,dy,dw,dh; R proposals on the lane axis.
    s = s_ref[...]
    x1, y1, x2, y2 = s[0:1, :], s[1:2, :], s[2:3, :], s[3:4, :]
    dx = s[4:5, :] * (1.0 / wx)
    dy = s[5:6, :] * (1.0 / wy)
    dw = jnp.minimum(s[6:7, :] * (1.0 / ww), BBOX_XFORM_CLIP)
    dh = jnp.minimum(s[7:8, :] * (1.0 / wh), BBOX_XFORM_CLIP)
    w = x2 - x1
    h = y2 - y1
    cx = x1 + 0.5 * w
    cy = y1 + 0.5 * h
    pcx = cx + dx * w
    pcy = cy + dy * h
    pw = 0.5 * w * jnp.exp(dw)
    ph = 0.5 * h * jnp.exp(dh)
    nx1 = jnp.clip(pcx - pw, 0.0, img_w)
    ny1 = jnp.clip(pcy - ph, 0.0, img_h)
    nx2 = jnp.clip(pcx + pw, 0.0, img_w)
    ny2 = jnp.clip(pcy + ph, 0.0, img_h)
    row = jax.lax.broadcasted_iota(jnp.int32, o_ref.shape, 0)
    o_ref[...] = jnp.where(row == 0, nx1,
                 jnp.where(row == 1, ny1,
                 jnp.where(row == 2, nx2,
                 jnp.where(row == 3, ny2, 0.0))))


def box_decode(boxes, deltas, img_h, img_w, weights=(1.0, 1.0, 1.0, 1.0)):
    """Batched lane-dense decode: boxes/deltas (R, 4) -> (R, 4)."""
    r = boxes.shape[0]
    r_pad = max(LANE, ((r + LANE - 1) // LANE) * LANE)
    stacked = jnp.concatenate([boxes.T, deltas.T], axis=0).astype(jnp.float32)  # (8, R)
    stacked = jnp.pad(stacked, ((0, 0), (0, r_pad - r)))
    out = pl.pallas_call(
        functools.partial(_box_decode_kernel, img_h=float(img_h), img_w=float(img_w),
                          wx=weights[0], wy=weights[1], ww=weights[2], wh=weights[3]),
        out_shape=jax.ShapeDtypeStruct((8, r_pad), jnp.float32),
        in_specs=[_VMEM],
        out_specs=_VMEM,
    )(stacked)
    return out[:4, :r].T


# ------------------------------- JAX glue ------------------------------------
def im2col(x, kh, kw, stride, pad, border_value=None):
    """x: (N, H, W, C) -> ((N*out_h*out_w, kh*kw*C), (N, out_h, out_w)).
    border_value (per-channel) lets the folded-normalization conv pad with the
    image mean so it matches zero-padding of the normalized image exactly."""
    n, h, w, c = x.shape
    xp = jnp.pad(x, ((0, 0), (pad, pad), (pad, pad), (0, 0)))
    if pad > 0 and border_value is not None:
        interior = jnp.pad(jnp.ones((n, h, w, 1), x.dtype),
                           ((0, 0), (pad, pad), (pad, pad), (0, 0)))
        xp = xp + (1.0 - interior) * border_value.reshape(1, 1, 1, c).astype(x.dtype)
    hp, wp = xp.shape[1], xp.shape[2]
    out_h = (hp - kh) // stride + 1
    out_w = (wp - kw) // stride + 1
    patches = []
    for i in range(kh):
        for j in range(kw):
            patches.append(xp[:, i:i + out_h * stride:stride, j:j + out_w * stride:stride, :])
    cols = jnp.concatenate(patches, axis=-1)
    return cols.reshape(n * out_h * out_w, kh * kw * c), (n, out_h, out_w)


def make_anchors(hf, wf, stride, scales):
    ys = (jnp.arange(hf, dtype=jnp.float32) + 0.5) * stride
    xs = (jnp.arange(wf, dtype=jnp.float32) + 0.5) * stride
    cy, cx = jnp.meshgrid(ys, xs, indexing="ij")
    per_scale = []
    for s in scales:
        half = s / 2.0
        per_scale.append(jnp.stack([cx - half, cy - half, cx + half, cy + half], axis=-1))
    anchors = jnp.stack(per_scale, axis=2)  # (hf, wf, A, 4)
    return anchors.reshape(-1, 4)


def roi_align(feat, boxes, out_size, spatial_scale):
    """feat: (Hf, Wf, C); boxes: (R, 4) image coords -> (R, P, P, C), f32 math."""
    feat = feat.astype(jnp.float32)
    hf, wf, _ = feat.shape
    sb = boxes * spatial_scale
    x1, y1, x2, y2 = sb[:, 0], sb[:, 1], sb[:, 2], sb[:, 3]
    bins = (jnp.arange(out_size, dtype=jnp.float32) + 0.5) / out_size
    ys = jnp.clip(y1[:, None] + bins[None, :] * (y2 - y1)[:, None], 0.0, hf - 1.0)
    xs = jnp.clip(x1[:, None] + bins[None, :] * (x2 - x1)[:, None], 0.0, wf - 1.0)
    y0 = jnp.floor(ys)
    x0 = jnp.floor(xs)
    y1i = jnp.minimum(y0 + 1.0, hf - 1.0)
    x1i = jnp.minimum(x0 + 1.0, wf - 1.0)
    wy = (ys - y0)[:, :, None, None]
    wx = (xs - x0)[:, None, :, None]
    y0, y1i = y0.astype(jnp.int32), y1i.astype(jnp.int32)
    x0, x1i = x0.astype(jnp.int32), x1i.astype(jnp.int32)

    def gather(yi, xi):
        return feat[yi[:, :, None], xi[:, None, :], :]

    f00, f01 = gather(y0, x0), gather(y0, x1i)
    f10, f11 = gather(y1i, x0), gather(y1i, x1i)
    return (f00 * (1 - wy) * (1 - wx) + f01 * (1 - wy) * wx
            + f10 * wy * (1 - wx) + f11 * wy * wx)


# ------------------------------- parameters ----------------------------------
def init_params(key):
    ks = jax.random.split(key, 10)

    def dense(k, fan_in, fan_out):
        w = jax.random.normal(k, (fan_in, fan_out), jnp.float32) * (fan_in ** -0.5)
        b = jnp.zeros((fan_out,), jnp.float32)
        return w, b

    p = {}
    p["image_mean"] = jnp.array([0.485, 0.456, 0.406], jnp.float32)
    p["image_std"] = jnp.array([0.229, 0.224, 0.225], jnp.float32)
    p["bb_w"], p["bb_b"] = dense(ks[0], 3 * 3 * C_IN, C_FEAT)            # backbone conv3x3 s2
    p["rpn_w"], p["rpn_b"] = dense(ks[1], 3 * 3 * C_FEAT, C_FEAT)        # RPN conv3x3
    p["rpn_cls_w"], p["rpn_cls_b"] = dense(ks[2], C_FEAT, A)             # objectness 1x1
    p["rpn_reg_w"], p["rpn_reg_b"] = dense(ks[3], C_FEAT, A * 4)         # anchor deltas 1x1
    p["fc1_w"], p["fc1_b"] = dense(ks[4], POOL * POOL * C_FEAT, HIDDEN)  # box head MLP
    p["fc2_w"], p["fc2_b"] = dense(ks[5], HIDDEN, HIDDEN)
    p["cls_w"], p["cls_b"] = dense(ks[6], HIDDEN, NUM_CLASSES)
    p["reg_w"], p["reg_b"] = dense(ks[7], HIDDEN, NUM_CLASSES * 4)
    return p


def prepare_params(p):
    """One-time: fold normalization into the backbone conv (f32 math), build
    lane-dense concatenated predictor weights, cast matmul weights to bf16."""
    q = dict(p)
    # (x - mean) / std folded into conv weight/bias (im2col row order = 9 patch
    # positions x C_IN channels).
    std_t = jnp.tile(p["image_std"], 9)
    mean_t = jnp.tile(p["image_mean"], 9)
    w_f = p["bb_w"] / std_t[:, None]
    q["bb_b"] = p["bb_b"] - jnp.sum(w_f * mean_t[:, None], axis=0)
    q["bb_w"] = w_f.astype(jnp.bfloat16)
    # RPN objectness + deltas as one 128-wide (lane-dense) output.
    rpn_out_w = jnp.concatenate([p["rpn_cls_w"], p["rpn_reg_w"]], axis=1)    # (C_FEAT, 15)
    rpn_out_b = jnp.concatenate([p["rpn_cls_b"], p["rpn_reg_b"]], axis=0)
    q["rpn_out_w"] = jnp.pad(rpn_out_w, ((0, 0), (0, LANE - rpn_out_w.shape[1]))).astype(jnp.bfloat16)
    q["rpn_out_b"] = jnp.pad(rpn_out_b, (0, LANE - rpn_out_b.shape[0]))
    q["rpn_w"] = p["rpn_w"].astype(jnp.bfloat16)
    # ROI-head class + regression predictors as one 128-wide output.
    head_out_w = jnp.concatenate([p["cls_w"], p["reg_w"]], axis=1)           # (HIDDEN, 15)
    head_out_b = jnp.concatenate([p["cls_b"], p["reg_b"]], axis=0)
    q["head_out_w"] = jnp.pad(head_out_w, ((0, 0), (0, LANE - head_out_w.shape[1]))).astype(jnp.bfloat16)
    q["head_out_b"] = jnp.pad(head_out_b, (0, LANE - head_out_b.shape[0]))
    q["fc1_w"] = p["fc1_w"].astype(jnp.bfloat16)
    q["fc2_w"] = p["fc2_w"].astype(jnp.bfloat16)
    return q


# -------------------------- GeneralizedRCNN.forward --------------------------
def generalized_rcnn_forward(params, images_nchw):
    """Eval-mode forward: returns (losses, detections) like the torch module."""
    n, c, h, w = images_nchw.shape
    original_image_sizes = [(h, w)] * n          # transform does not resize
    image_sizes = [(h, w)] * n

    # ---- transform: normalization is folded into the backbone conv weights ----
    x = jnp.transpose(images_nchw, (0, 2, 3, 1)).astype(jnp.float32)   # NCHW -> NHWC

    # ---- backbone: conv3x3/s2 + ReLU (im2col glue + gridded Pallas matmul) ----
    cols, (_, hf, wf) = im2col(x, 3, 3, stride=STRIDE, pad=1,
                               border_value=params["image_mean"])
    feat = matmul_bias(cols.astype(jnp.bfloat16), params["bb_w"], params["bb_b"],
                       relu=True, out_dtype=jnp.bfloat16)
    feat = feat.reshape(n, hf, wf, C_FEAT)

    # ---- RPN head: fused conv + objectness + deltas (single kernel, batched) ----
    cols_r, _ = im2col(feat, 3, 3, stride=1, pad=1)
    rpn_out = rpn_head(cols_r, params["rpn_w"], params["rpn_b"],
                       params["rpn_out_w"], params["rpn_out_b"])        # (n*hf*wf, 128)
    scores_all = rpn_out[:, :A].reshape(n, hf * wf * A)                 # sigmoid already applied
    deltas_all = rpn_out[:, A:A + 4 * A].reshape(n * hf * wf * A, 4)

    anchors = make_anchors(hf, wf, STRIDE, ANCHOR_SCALES)               # (hf*wf*A, 4)
    anchors_all = jnp.tile(anchors, (n, 1))
    boxes_all = box_decode(anchors_all, deltas_all, h, w)               # batched lane-dense decode
    boxes_all = boxes_all.reshape(n, hf * wf * A, 4)

    top_sc, top_idx = jax.lax.top_k(scores_all, PRE_NMS_TOPK)           # (n, K)
    proposals = jnp.take_along_axis(boxes_all, top_idx[..., None], axis=1)   # (n, K, 4)
    proposals_scores = top_sc
    # TODO(synk): torchvision RPN applies per-image NMS to proposals; no clean Pallas equivalent, top-k only.
    proposal_losses = {}   # eval mode -> empty loss dict

    # ---- ROI heads: ROI align (glue, vmapped) + ONE fused MLP/predictor/softmax kernel ----
    pooled = jax.vmap(lambda f, b: roi_align(f, b, POOL, 1.0 / STRIDE))(feat, proposals)
    flat = pooled.reshape(n * PRE_NMS_TOPK, -1).astype(jnp.bfloat16)
    head_out = roi_head(flat, params)                                   # (n*K, 128) f32
    probs = head_out[:, :NUM_CLASSES]
    box_reg = head_out[:, NUM_CLASSES:NUM_CLASSES + NUM_CLASSES * 4].reshape(-1, NUM_CLASSES, 4)
    labels = jnp.argmax(probs[:, 1:], axis=-1) + 1                      # skip background
    scores = jnp.max(probs[:, 1:], axis=-1)
    sel_deltas = jnp.take_along_axis(box_reg, labels[:, None, None], axis=1)[:, 0, :]
    final_boxes = box_decode(proposals.reshape(-1, 4), sel_deltas, h, w,
                             weights=(10.0, 10.0, 5.0, 5.0))            # bbox_reg_weights
    final_boxes = final_boxes.reshape(n, PRE_NMS_TOPK, 4)
    # TODO(synk): roi_heads postprocess (score threshold, per-class NMS, small-box removal) omitted.
    detector_losses = {}   # eval mode -> empty loss dict

    # ---- transform.postprocess: rescale boxes to original image sizes ----
    detections = []
    for i in range(n):
        ih, iw = image_sizes[i]
        oh, ow = original_image_sizes[i]
        ratio = jnp.array([ow / iw, oh / ih, ow / iw, oh / ih], jnp.float32)
        detections.append({
            "boxes": final_boxes[i] * ratio[None, :],
            "scores": scores[i * PRE_NMS_TOPK:(i + 1) * PRE_NMS_TOPK],
            "labels": labels[i * PRE_NMS_TOPK:(i + 1) * PRE_NMS_TOPK],
        })

    losses = {}
    losses.update(detector_losses)
    losses.update(proposal_losses)
    return losses, detections


# ----------------------------------- main -------------------------------------
if __name__ == "__main__":
    key = jax.random.PRNGKey(0)
    pkey, xkey = jax.random.split(key)
    params = prepare_params(init_params(pkey))
    images = jax.random.uniform(xkey, (N_IMGS, C_IN, IMG_H, IMG_W), jnp.float32)

    losses, detections = generalized_rcnn_forward(params, images)
    for det in detections:
        jax.block_until_ready(det["boxes"])
        jax.block_until_ready(det["scores"])
        jax.block_until_ready(det["labels"])

    assert detections[0]["boxes"].shape == (PRE_NMS_TOPK, 4)
    assert detections[0]["scores"].shape == (PRE_NMS_TOPK,)
    assert losses == {}
    print("KERNEL_OK")
</pallas_src>

<mosaic_0001>
module attributes {stable_mosaic.version = 11 : i64} {
  func.func @_matmul_bias_kernel(%arg0: i32, %arg1: memref<128x27xbf16, #tpu.memory_space<vmem>>, %arg2: memref<27x32xbf16, #tpu.memory_space<vmem>>, %arg3: memref<1x32xf32, #tpu.memory_space<vmem>>, %arg4: memref<128x32xbf16, #tpu.memory_space<vmem>>) attributes {dimension_semantics = [#tpu.dimension_semantics<parallel>], iteration_bounds = array<i64: 4>, scalar_prefetch = 0 : i64, scratch_operands = 0 : i64, tpu.core_type = #tpu.core_type<tc>, window_params = [{transform_indices = @transform_0, window_bounds = array<i64: 128, 27>}, {pipeline_mode = #tpu.pipeline_mode<synchronous>, transform_indices = @transform_1, window_bounds = array<i64: 27, 32>}, {pipeline_mode = #tpu.pipeline_mode<synchronous>, transform_indices = @transform_2, window_bounds = array<i64: 1, 32>}, {transform_indices = @transform_3, window_bounds = array<i64: 128, 32>}]} {
    %c0 = arith.constant 0 : index
    %c0_0 = arith.constant 0 : index
    %0 = vector.load %arg1[%c0, %c0_0] : memref<128x27xbf16, #tpu.memory_space<vmem>>, vector<128x27xbf16>
    %c0_1 = arith.constant 0 : index
    %c0_2 = arith.constant 0 : index
    %1 = vector.load %arg2[%c0_1, %c0_2] : memref<27x32xbf16, #tpu.memory_space<vmem>>, vector<27x32xbf16>
    %cst = arith.constant dense<0.000000e+00> : vector<128x32xf32>
    %2 = tpu.matmul %0, %1, %cst {dimension_numbers = #tpu.dot_dimension_numbers<[1], [0], [0], [1], [0, 0, 1, 1], [], []>} : vector<128x27xbf16>, vector<27x32xbf16>, vector<128x32xf32> -> vector<128x32xf32>
    %c0_3 = arith.constant 0 : index
    %c0_4 = arith.constant 0 : index
    %3 = vector.load %arg3[%c0_3, %c0_4] : memref<1x32xf32, #tpu.memory_space<vmem>>, vector<1x32xf32>
    %4 = vector.broadcast %3 : vector<1x32xf32> to vector<128x32xf32>
    %5 = arith.addf %2, %4 : vector<128x32xf32>
    %cst_5 = arith.constant 0.000000e+00 : f32
    %6 = vector.broadcast %cst_5 : f32 to vector<128x32xf32>
    %7 = arith.maximumf %5, %6 : vector<128x32xf32>
    %8 = arith.truncf %7 : vector<128x32xf32> to vector<128x32xbf16>
    %c0_6 = arith.constant 0 : index
    %c0_7 = arith.constant 0 : index
    %9 = vector.load %arg4[%c0_6, %c0_7] : memref<128x32xbf16, #tpu.memory_space<vmem>>, vector<128x32xbf16>
    tpu.vector_store %arg4[%c0_6, %c0_7], %8 {strides = array<i32>} : memref<128x32xbf16, #tpu.memory_space<vmem>>, vector<128x32xbf16>,
    return
  }
  func.func @transform_0(%arg0: i32) -> (i32, i32) {
    %c0_i32 = arith.constant 0 : i32
    %c0_i32_0 = arith.constant 0 : i32
    return %arg0, %c0_i32 : i32, i32
  }
  func.func @transform_1(%arg0: i32) -> (i32, i32) {
    %c0_i32 = arith.constant 0 : i32
    %c0_i32_0 = arith.constant 0 : i32
    %c0_i32_1 = arith.constant 0 : i32
    return %c0_i32, %c0_i32_0 : i32, i32
  }
  func.func @transform_2(%arg0: i32) -> (i32, i32) {
    %c0_i32 = arith.constant 0 : i32
    %c0_i32_0 = arith.constant 0 : i32
    %c0_i32_1 = arith.constant 0 : i32
    return %c0_i32, %c0_i32_0 : i32, i32
  }
  func.func @transform_3(%arg0: i32) -> (i32, i32) {
    %c0_i32 = arith.constant 0 : i32
    %c0_i32_0 = arith.constant 0 : i32
    return %arg0, %c0_i32 : i32, i32
  }
}

</mosaic_0001>

<llo_original>
// kernel: tpu_custom_call.1
$region0: #{tpu_custom_call.1}
  #allocation0 [shape = 'u32[]', space=smem, size = 0x4, offset = 0x4, fixed_abs, tag = 'smem constant byte address 0x4 - core index']
  #allocation1 [shape = 'u32[144,128]{1,0:T(1,128)}', space=vmem, size = 0x12000, scoped, tag = 'internal scratch']
  %s0 = inlined_call_operand.vmem [shape: bf16[512,27], index: 0, kind: input, shape index: {}]
  %s1 = inlined_call_operand.vmem [shape: bf16[27,32], index: 1, kind: input, shape index: {}]
  %s2 = inlined_call_operand.vmem [shape: f32[1,32], index: 2, kind: input, shape index: {}]
  %s3 = inlined_call_operand.vmem [shape: bf16[512,32], index: 3, kind: output, shape index: {}]
  %s4 = sld [smem:[#allocation0]]
  $region45: #{tpu_custom_call.1} parent=0
    _
  %s6 = ssub.s32 1, %s4
  %s7 = scalar_select 0, %s6, %s4
  loop: start=0, step=1, limit=6
  $region2: #{tpu_custom_call.1} parent=0 // loop_pre_header
    _
  $region3: #{tpu_custom_call.1} parent=0 // loop_header
    %s9 = sphi 0, %s13
    %p10 = scmp.ge.s32.totalorder %s9, 6
    %s19 = sphi 0, %s21
    %s22 = sphi 0, %s19
    %s23 = sphi 0, %s22
    %s39 = sphi 0, %s23
    %s43 = sphi 0, %s43
    %s45 = sphi 0, %s43
    %s46 = sphi 0, %s45
    %s60 = sphi 0, %s46
    %s64 = sphi 0, %s64
    %s66 = sphi 0, %s64
    %s67 = sphi 0, %s66
    %s81 = sphi 0, %s67
    %s87 = sphi 0, %s89
    %s90 = sphi 0, %s87
    %s91 = sphi 0, %s90
    %s107 = sphi 0, %s91
  $region4: #{tpu_custom_call.1} parent=0 // loop_header_branch
    %12 = sbr.rel (%p10) target = $region8
  $region5: #{tpu_custom_call.1} parent=0 // loop_body
    %s14 = ssub.s32 %s9, 1
    %s15 = ssub.s32 %s9, 2
    %s16 = sadd.s32 %s9, 1
    %s17 = ssub.s32 %s9, %s16
    %p18 = scmp.eq.s32.totalorder %s17, 0
    %s20 = sadd.s32 %s19, 1
    %s21 = scalar_select %p18, %s19, %s20
    %p24 = pneg %p18
    %p25 = scmp.eq.s32.totalorder %s9, 3
    %p26 = por %p24, %p25
    %p27 = scmp.ne.s32.totalorder %s19, %s22
    %p28 = scmp.eq.s32.totalorder %s9, 0
    %p29 = por %p27, %p28
    %p30 = scmp.ne.s32.totalorder %s19, %s22
    %p31 = scmp.eq.s32.totalorder %s14, 3
    %p32 = por %p30, %p31
    %p33 = scmp.ne.s32.totalorder %s22, %s23
    %p34 = scmp.eq.s32.totalorder %s14, 0
    %p35 = por %p33, %p34
    %p36 = scmp.ne.s32.totalorder %s22, %s23
    %p37 = scmp.eq.s32.totalorder %s15, 3
    %p38 = por %p36, %p37
    %p40 = scmp.ne.s32.totalorder %s23, %s39
    %p41 = scmp.eq.s32.totalorder %s15, 0
    %p42 = por %p40, %p41
    %s44 = sadd.s32 %s43, 1
    %p47 = scmp.eq.s32.totalorder %s9, 3
    %p48 = scmp.ne.s32.totalorder %s43, %s45
    %p49 = scmp.eq.s32.totalorder %s9, 0
    %p50 = por %p48, %p49
    %p51 = scmp.ne.s32.totalorder %s43, %s45
    %p52 = scmp.eq.s32.totalorder %s14, 3
    %p53 = por %p51, %p52
    %p54 = scmp.ne.s32.totalorder %s45, %s46
    %p55 = scmp.eq.s32.totalorder %s14, 0
    %p56 = por %p54, %p55
    %p57 = scmp.ne.s32.totalorder %s45, %s46
    %p58 = scmp.eq.s32.totalorder %s15, 3
    %p59 = por %p57, %p58
    %p61 = scmp.ne.s32.totalorder %s46, %s60
    %p62 = scmp.eq.s32.totalorder %s15, 0
    %p63 = por %p61, %p62
    %s65 = sadd.s32 %s64, 1
    %p68 = scmp.eq.s32.totalorder %s9, 3
    %p69 = scmp.ne.s32.totalorder %s64, %s66
    %p70 = scmp.eq.s32.totalorder %s9, 0
    %p71 = por %p69, %p70
    %p72 = scmp.ne.s32.totalorder %s64, %s66
    %p73 = scmp.eq.s32.totalorder %s14, 3
    %p74 = por %p72, %p73
    %p75 = scmp.ne.s32.totalorder %s66, %s67
    %p76 = scmp.eq.s32.totalorder %s14, 0
    %p77 = por %p75, %p76
    %p78 = scmp.ne.s32.totalorder %s66, %s67
    %p79 = scmp.eq.s32.totalorder %s15, 3
    %p80 = por %p78, %p79
    %p82 = scmp.ne.s32.totalorder %s67, %s81
    %p83 = scmp.eq.s32.totalorder %s15, 0
    %p84 = por %p82, %p83
    %s85 = ssub.s32 %s9, %s16
    %p86 = scmp.eq.s32.totalorder %s85, 0
    %s88 = sadd.s32 %s87, 1
    %s89 = scalar_select %p86, %s87, %s88
    %p92 = pneg %p86
    %p93 = scmp.eq.s32.totalorder %s9, 3
    %p94 = por %p92, %p93
    %p95 = scmp.ne.s32.totalorder %s87, %s90
    %p96 = scmp.eq.s32.totalorder %s9, 0
    %p97 = por %p95, %p96
    %p98 = scmp.ne.s32.totalorder %s87, %s90
    %p99 = scmp.eq.s32.totalorder %s14, 3
    %p100 = por %p98, %p99
    %p101 = scmp.ne.s32.totalorder %s90, %s91
    %p102 = scmp.eq.s32.totalorder %s14, 0
    %p103 = por %p101, %p102
    %p104 = scmp.ne.s32.totalorder %s90, %s91
    %p105 = scmp.eq.s32.totalorder %s15, 3
    %p106 = por %p104, %p105
    %p108 = scmp.ne.s32.totalorder %s91, %s107
    %p109 = scmp.eq.s32.totalorder %s15, 0
    %p110 = por %p108, %p109
    %p111 = scmp.le.s32.totalorder 1, %s9
    %p112 = scmp.lt.s32.totalorder %s9, 5
    %p113 = pnand %p111, %p112
    %p114 = pneg %p113
    // Predicated region
    $region9: #{tpu_custom_call.1} parent=5 // pred_check
      _
    $region10: #{tpu_custom_call.1} parent=5 // pred_check_branch
      %116 = sbr.rel (%p113) target = $region12
    $region11: #{tpu_custom_call.1} parent=5 // pred_region
      %s117 = ssub.s32 %s9, 1
      // Predicated region
      $region13: #{tpu_custom_call.1} parent=11 // pred_check
        %p118 = pneg %p56
      $region14: #{tpu_custom_call.1} parent=11 // pred_check_branch
        %120 = sbr.rel (%p118) target = $region16
      $region15: #{tpu_custom_call.1} parent=11 // pred_region
        _
      $region16: #{tpu_custom_call.1} parent=11 // pred_fallthru
        _
      // Predicated region
      $region17: #{tpu_custom_call.1} parent=11 // pred_check
        %p121 = pneg %p77
      $region18: #{tpu_custom_call.1} parent=11 // pred_check_branch
        %123 = sbr.rel (%p121) target = $region20
      $region19: #{tpu_custom_call.1} parent=11 // pred_region
        _
      $region20: #{tpu_custom_call.1} parent=11 // pred_fallthru
        _
    $region12: #{tpu_custom_call.1} parent=5 // pred_fallthru
      _
    %p124 = scmp.lt.s32.totalorder %s9, 4
    // Predicated region
    $region21: #{tpu_custom_call.1} parent=5 // pred_check
      %p125 = pneg %p124
    $region22: #{tpu_custom_call.1} parent=5 // pred_check_branch
      %127 = sbr.rel (%p125) target = $region24
    $region23: #{tpu_custom_call.1} parent=5 // pred_region
      // Predicated region
      $region25: #{tpu_custom_call.1} parent=23 // pred_check
        %p128 = pneg %p29
      $region26: #{tpu_custom_call.1} parent=23 // pred_check_branch
        %130 = sbr.rel (%p128) target = $region28
      $region27: #{tpu_custom_call.1} parent=23 // pred_region
        %s131 = smul.u32 16, %s9
        %p132 = scmp.lt.s32.totalorder %s131, 63
        %s133 = scalar_select %p132, %s131, 63
        %s134 = smul.addr %s133, 4
        %s135 = scalar_lea.vmem %s0, %s134
        %s136 = smul.u32 16, %s9
      $region28: #{tpu_custom_call.1} parent=23 // pred_fallthru
        _
    $region24: #{tpu_custom_call.1} parent=5 // pred_fallthru
      _
    %p137 = scmp.le.s32.totalorder 1, %s9
    %p138 = scmp.lt.s32.totalorder %s9, 5
    %p139 = pnand %p137, %p138
    %p140 = pneg %p139
    // Predicated region
    $region29: #{tpu_custom_call.1} parent=5 // pred_check
      _
    $region30: #{tpu_custom_call.1} parent=5 // pred_check_branch
      %142 = sbr.rel (%p139) target = $region32
    $region31: #{tpu_custom_call.1} parent=5 // pred_region
      %s143 = ssub.s32 %s9, 1
      %s144 = smul.u32 16, %s14
      %p145 = scmp.lt.s32.totalorder %s144, 63
      %s146 = scalar_select %p145, %s144, 63
      %s147 = smul.addr %s146, 4
      %s148 = scalar_lea.vmem %s0, %s147
      %p149 = pneg %p35
      %p150 = pneg %p32
      %p151 = pneg %p56
      %p152 = pneg %p53
      %p153 = pneg %p77
      %p154 = pneg %p74
      %p155 = pneg %p103
      %p156 = pneg %p100
      %s157 = smul.u32 16, %s14
      %p158 = scmp.lt.s32.totalorder %s157, 63
      %s159 = scalar_select %p158, %s157, 63
      %s160 = smul.addr %s159, 4
      %s161 = scalar_lea.vmem %s3, %s160
      %s162 = smul.u32 16, %s14
      %p163 = scmp.lt.s32.totalorder %s162, 63
      %s164 = scalar_select %p163, %s162, 63
      %s165 = smul.addr %s164, 4
      %s166 = scalar_lea.vmem %s0, %s165
      %s167 = smul.u32 16, %s14
      %s168 = smul.u32 16, %s14
      %p169 = scmp.lt.s32.totalorder %s168, 63
      %s170 = scalar_select %p169, %s168, 63
      %s171 = smul.addr %s170, 4
      %s172 = scalar_lea.vmem %s3, %s171
      %s173 = smul.u32 16, %s14
      %v175 = vld [vmem:[%s166] sm:$0xf]
      %v176 = vld [vmem:[%s166 + $0x4] sm:$0xf]
      %v177 = vld [vmem:[%s166 + $0x8] sm:$0xf]
      %v178 = vld [vmem:[%s166 + $0xc] sm:$0xf]
      %v179 = vld [vmem:[%s166 + $0x10] sm:$0xf]
      %v180 = vld [vmem:[%s166 + $0x14] sm:$0xf]
      %v181 = vld [vmem:[%s166 + $0x18] sm:$0xf]
      %v182 = vld [vmem:[%s166 + $0x1c] sm:$0xf]
      %v183 = vld [vmem:[%s166 + $0x20] sm:$0xf]
      %v184 = vld [vmem:[%s166 + $0x24] sm:$0xf]
      %v185 = vld [vmem:[%s166 + $0x28] sm:$0xf]
      %v186 = vld [vmem:[%s166 + $0x2c] sm:$0xf]
      %v187 = vld [vmem:[%s166 + $0x30] sm:$0xf]
      %v188 = vld [vmem:[%s166 + $0x34] sm:$0xf]
      %v189 = vld [vmem:[%s166 + $0x38] sm:$0xf]
      %v190 = vld [vmem:[%s166 + $0x3c] sm:$0xf]
      %v191 = vld [vmem:[%s1] sm:$0xf]
      %v192 = vld [vmem:[%s1 + $0x4] sm:$0xf]
      %v193 = vld [vmem:[%s1 + $0x8] sm:$0xf]
      %v194 = vld [vmem:[%s1 + $0xc] sm:$0x3]
      %v195 = vld [vmem:[%s2] sm:$0x1]
      %v197 = vlaneseq
      %v198 = vshrl.u32 %v197, 7
      %v199 = vsub.s32 0, %v198
      %v200 = vrot.slane %v195, %v199
      %v218 = vunpack.c.l.b16 %v175
      %v219 = vunpack.c.l.b16 %v176
      %v220 = vunpack.c.l.b16 %v177
      %v221 = vunpack.c.l.b16 %v178
      %v222 = vunpack.c.l.b16 %v179
      %v223 = vunpack.c.l.b16 %v180
      %v224 = vunpack.c.l.b16 %v181
      %v225 = vunpack.c.l.b16 %v182
      %v226 = vunpack.c.l.b16 %v183
      %v227 = vunpack.c.l.b16 %v184
      %v228 = vunpack.c.l.b16 %v185
      %v229 = vunpack.c.l.b16 %v186
      %v230 = vunpack.c.l.b16 %v187
      %v231 = vunpack.c.l.b16 %v188
      %v232 = vunpack.c.l.b16 %v189
      %v233 = vunpack.c.l.b16 %v190
      %v234 = vpack.c.b16 %v219, %v218
      %v235 = vpack.c.b16 %v221, %v220
      %v236 = vpack.c.b16 %v223, %v222
      %v237 = vpack.c.b16 %v225, %v224
      %v238 = vpack.c.b16 %v227, %v226
      %v239 = vpack.c.b16 %v229, %v228
      %v240 = vpack.c.b16 %v231, %v230
      %v241 = vpack.c.b16 %v233, %v232
      %v246 = vunpack.c.l.b16 %v191
      %v247 = vunpack.c.l.b16 %v192
      %v248 = vunpack.c.l.b16 %v193
      %v249 = vunpack.c.l.b16 %v194
      %v250 = vpack.c.b16 %v247, %v246
      %v251 = vpack.c.b16 %v249, %v248
      %vm253 = vcmask 220160
      %v255 = vsel %vm253, %v234, 0
      %v258 = vsel %vm253, %v235, 0
      %v261 = vsel %vm253, %v236, 0
      %v264 = vsel %vm253, %v237, 0
      %v267 = vsel %vm253, %v238, 0
      %v270 = vsel %vm253, %v239, 0
      %v273 = vsel %vm253, %v240, 0
      %v276 = vsel %vm253, %v241, 0
      %vm278 = vcmask 1044480
      %vm279 = vcmask 1045504
      %v280 = vsel %vm278, 4294967295, 65535
      %v281 = vsel %vm279, %v280, 0
      %v283 = vand.u32 %v251, %v281
      %285 = vmatprep.subr.bf16.mxu0 0
      %286 = vmatpush1.bf16.msra.mxu0 %v250
      %287 = vmatprep.subr.bf16.mxu0 0
      %288 = vmatpush1.bf16.msra.mxu0 %v283
      %289 = vmatprep.subr.bf16.mxu0 0
      %290 = vmatpush1.bf16.msra.mxu0 0
      %291 = vmatprep.subr.bf16.mxu0 0
      %292 = vmatpush1.bf16.msra.mxu0 0
      %293 = vmatprep.subr.bf16.mxu0 0
      %294 = vmatpush1.bf16.msra.mxu0 0
      %295 = vmatprep.subr.bf16.mxu0 0
      %296 = vmatpush1.bf16.msra.mxu0 0
      %297 = vmatprep.subr.bf16.mxu0 0
      %298 = vmatpush1.bf16.msra.mxu0 0
      %299 = vmatprep.subr.bf16.mxu0 0
      %300 = vmatpush1.bf16.msra.mxu0 0
      %301 = vmatprep.subr.bf16.mxu0 0
      %302 = vmatpush1.bf16.msra.mxu0 0
      %303 = vmatprep.subr.bf16.mxu0 0
      %304 = vmatpush1.bf16.msra.mxu0 0
      %305 = vmatprep.subr.bf16.mxu0 0
      %306 = vmatpush1.bf16.msra.mxu0 0
      %307 = vmatprep.subr.bf16.mxu0 0
      %308 = vmatpush1.bf16.msra.mxu0 0
      %309 = vmatprep.subr.bf16.mxu0 0
      %310 = vmatpush1.bf16.msra.mxu0 0
      %311 = vmatprep.subr.bf16.mxu0 0
      %312 = vmatpush1.bf16.msra.mxu0 0
      %313 = vmatprep.subr.bf16.mxu0 0
      %314 = vmatpush1.bf16.msra.mxu0 0
      %315 = vmatprep.subr.bf16.mxu0 0
      %316 = vmatpush1.bf16.msra.mxu0 0
      %317 = vmatprep.mubr.bf16.mxu0 0
      %318 = vmatmul.mubr.bf16.gmra.mrb[0].mxu0 %v255
      %v319 = vpop.f32.mrb[0].mxu0
      %v320 = vadd.f32 %v200, %v319
      %v321 = vpop.f32.mrb[0].mxu0
      %v322 = vpop.f32.mrb[0].mxu0
      %v323 = vadd.f32 %v200, %v322
      %v324 = vpop.f32.mrb[0].mxu0
      %325 = vmatprep.mubr.bf16.mxu0 0
      %326 = vmatmul.mubr.bf16.gmra.mrb[0].mxu0 %v258
      %v327 = vpop.f32.mrb[0].mxu0
      %v328 = vadd.f32 %v200, %v327
      %v329 = vpop.f32.mrb[0].mxu0
      %v330 = vpop.f32.mrb[0].mxu0
      %v331 = vadd.f32 %v200, %v330
      %v332 = vpop.f32.mrb[0].mxu0
      %333 = vmatprep.mubr.bf16.mxu0 0
      %334 = vmatmul.mubr.bf16.gmra.mrb[0].mxu0 %v261
      %v335 = vpop.f32.mrb[0].mxu0
      %v336 = vadd.f32 %v200, %v335
      %v337 = vpop.f32.mrb[0].mxu0
      %v338 = vpop.f32.mrb[0].mxu0
      %v339 = vadd.f32 %v200, %v338
      %v340 = vpop.f32.mrb[0].mxu0
      %341 = vmatprep.mubr.bf16.mxu0 0
      %342 = vmatmul.mubr.bf16.gmra.mrb[0].mxu0 %v264
      %v343 = vpop.f32.mrb[0].mxu0
      %v344 = vadd.f32 %v200, %v343
      %v345 = vpop.f32.mrb[0].mxu0
      %v346 = vpop.f32.mrb[0].mxu0
      %v347 = vadd.f32 %v200, %v346
      %v348 = vpop.f32.mrb[0].mxu0
      %349 = vmatprep.mubr.bf16.mxu0 0
      %350 = vmatmul.mubr.bf16.gmra.mrb[0].mxu0 %v267
      %v351 = vpop.f32.mrb[0].mxu0
      %v352 = vadd.f32 %v200, %v351
      %v353 = vpop.f32.mrb[0].mxu0
      %v354 = vpop.f32.mrb[0].mxu0
      %v355 = vadd.f32 %v200, %v354
      %v356 = vpop.f32.mrb[0].mxu0
      %357 = vmatprep.mubr.bf16.mxu0 0
      %358 = vmatmul.mubr.bf16.gmra.mrb[0].mxu0 %v270
      %v359 = vpop.f32.mrb[0].mxu0
      %v360 = vadd.f32 %v200, %v359
      %v361 = vpop.f32.mrb[0].mxu0
      %v362 = vpop.f32.mrb[0].mxu0
      %v363 = vadd.f32 %v200, %v362
      %v364 = vpop.f32.mrb[0].mxu0
      %365 = vmatprep.mubr.bf16.mxu0 0
      %366 = vmatmul.mubr.bf16.gmra.mrb[0].mxu0 %v273
      %v367 = vpop.f32.mrb[0].mxu0
      %v368 = vadd.f32 %v200, %v367
      %v369 = vpop.f32.mrb[0].mxu0
      %v370 = vpop.f32.mrb[0].mxu0
      %v371 = vadd.f32 %v200, %v370
      %v372 = vpop.f32.mrb[0].mxu0
      %373 = vmatprep.mubr.bf16.mxu0 0
      %374 = vmatmul.mubr.bf16.gmra.mrb[0].mxu0 %v276
      %v375 = vpop.f32.mrb[0].mxu0
      %v376 = vadd.f32 %v200, %v375
      %v377 = vpop.f32.mrb[0].mxu0
      %v378 = vpop.f32.mrb[0].mxu0
      %v379 = vadd.f32 %v200, %v378
      %v380 = vpop.f32.mrb[0].mxu0
      %381 = vdwg.mxu0
      %v382 = vmax.f32 %v320, 0.0
      %v383 = vmax.f32 %v323, 0.0
      %v384 = vmax.f32 %v328, 0.0
      %v385 = vmax.f32 %v331, 0.0
      %v386 = vmax.f32 %v336, 0.0
      %v387 = vmax.f32 %v339, 0.0
      %v388 = vmax.f32 %v344, 0.0
      %v389 = vmax.f32 %v347, 0.0
      %v390 = vmax.f32 %v352, 0.0
      %v391 = vmax.f32 %v355, 0.0
      %v392 = vmax.f32 %v360, 0.0
      %v393 = vmax.f32 %v363, 0.0
      %v394 = vmax.f32 %v368, 0.0
      %v395 = vmax.f32 %v371, 0.0
      %v396 = vmax.f32 %v376, 0.0
      %v397 = vmax.f32 %v379, 0.0
      %v398 = vpack.c.bf16 %v383, %v382
      %v399 = vpack.c.bf16 %v385, %v384
      %v400 = vpack.c.bf16 %v387, %v386
      %v401 = vpack.c.bf16 %v389, %v388
      %v402 = vpack.c.bf16 %v391, %v390
      %v403 = vpack.c.bf16 %v393, %v392
      %v404 = vpack.c.bf16 %v395, %v394
      %v405 = vpack.c.bf16 %v397, %v396
      %v414 = vunpack.c.l.b16 %v398
      %v415 = vunpack.c.h.b16 %v398
      %v416 = vunpack.c.l.b16 %v399
      %v417 = vunpack.c.h.b16 %v399
      %v418 = vunpack.c.l.b16 %v400
      %v419 = vunpack.c.h.b16 %v400
      %v420 = vunpack.c.l.b16 %v401
      %v421 = vunpack.c.h.b16 %v401
      %v422 = vunpack.c.l.b16 %v402
      %v423 = vunpack.c.h.b16 %v402
      %v424 = vunpack.c.l.b16 %v403
      %v425 = vunpack.c.h.b16 %v403
      %v426 = vunpack.c.l.b16 %v404
      %v427 = vunpack.c.h.b16 %v404
      %v428 = vunpack.c.l.b16 %v405
      %v429 = vunpack.c.h.b16 %v405
      %v430 = vpack.c.b16 %v414, %v414
      %v431 = vpack.c.b16 %v415, %v415
      %v432 = vpack.c.b16 %v416, %v416
      %v433 = vpack.c.b16 %v417, %v417
      %v434 = vpack.c.b16 %v418, %v418
      %v435 = vpack.c.b16 %v419, %v419
      %v436 = vpack.c.b16 %v420, %v420
      %v437 = vpack.c.b16 %v421, %v421
      %v438 = vpack.c.b16 %v422, %v422
      %v439 = vpack.c.b16 %v423, %v423
      %v440 = vpack.c.b16 %v424, %v424
      %v441 = vpack.c.b16 %v425, %v425
      %v442 = vpack.c.b16 %v426, %v426
      %v443 = vpack.c.b16 %v427, %v427
      %v444 = vpack.c.b16 %v428, %v428
      %v445 = vpack.c.b16 %v429, %v429
      %vm462 = vcmask 257024
      %463 = vst.msk [vmem:[%s172] sm:$0xf] %vm462, %v430
      %464 = vst.msk [vmem:[%s172 + $0x4] sm:$0xf] %vm462, %v431
      %465 = vst.msk [vmem:[%s172 + $0x8] sm:$0xf] %vm462, %v432
      %466 = vst.msk [vmem:[%s172 + $0xc] sm:$0xf] %vm462, %v433
      %467 = vst.msk [vmem:[%s172 + $0x10] sm:$0xf] %vm462, %v434
      %468 = vst.msk [vmem:[%s172 + $0x14] sm:$0xf] %vm462, %v435
      %469 = vst.msk [vmem:[%s172 + $0x18] sm:$0xf] %vm462, %v436
      %470 = vst.msk [vmem:[%s172 + $0x1c] sm:$0xf] %vm462, %v437
      %471 = vst.msk [vmem:[%s172 + $0x20] sm:$0xf] %vm462, %v438
      %472 = vst.msk [vmem:[%s172 + $0x24] sm:$0xf] %vm462, %v439
      %473 = vst.msk [vmem:[%s172 + $0x28] sm:$0xf] %vm462, %v440
      %474 = vst.msk [vmem:[%s172 + $0x2c] sm:$0xf] %vm462, %v441
      %475 = vst.msk [vmem:[%s172 + $0x30] sm:$0xf] %vm462, %v442
      %476 = vst.msk [vmem:[%s172 + $0x34] sm:$0xf] %vm462, %v443
      %477 = vst.msk [vmem:[%s172 + $0x38] sm:$0xf] %vm462, %v444
      %478 = vst.msk [vmem:[%s172 + $0x3c] sm:$0xf] %vm462, %v445
      %s479 = smul.u32 16, %s14
      %p480 = scmp.lt.s32.totalorder %s479, 63
      %s481 = scalar_select %p480, %s479, 63
      %s482 = smul.addr %s481, 4
      %s483 = scalar_lea.vmem %s3, %s482
      // Predicated region
      $region33: #{tpu_custom_call.1} parent=31 // pred_check
        %p484 = pneg %p100
      $region34: #{tpu_custom_call.1} parent=31 // pred_check_branch
        %486 = sbr.rel (%p484) target = $region36
      $region35: #{tpu_custom_call.1} parent=31 // pred_region
        %s487 = smul.u32 16, %s14
      $region36: #{tpu_custom_call.1} parent=31 // pred_fallthru
        _
    $region32: #{tpu_custom_call.1} parent=5 // pred_fallthru
      _
    %p488 = scmp.le.s32.totalorder 2, %s9
    // Predicated region
    $region37: #{tpu_custom_call.1} parent=5 // pred_check
      %p489 = pneg %p488
    $region38: #{tpu_custom_call.1} parent=5 // pred_check_branch
      %491 = sbr.rel (%p489) target = $region40
    $region39: #{tpu_custom_call.1} parent=5 // pred_region
      %s492 = ssub.s32 %s9, 2
      // Predicated region
      $region41: #{tpu_custom_call.1} parent=39 // pred_check
        %p493 = pneg %p106
      $region42: #{tpu_custom_call.1} parent=39 // pred_check_branch
        %495 = sbr.rel (%p493) target = $region44
      $region43: #{tpu_custom_call.1} parent=39 // pred_region
        %s496 = smul.u32 16, %s15
        %p497 = scmp.lt.s32.totalorder %s496, 63
        %s498 = scalar_select %p497, %s496, 63
        %s499 = smul.addr %s498, 4
        %s500 = scalar_lea.vmem %s3, %s499
      $region44: #{tpu_custom_call.1} parent=39 // pred_fallthru
        _
    $region40: #{tpu_custom_call.1} parent=5 // pred_fallthru
      _
  $region6: #{tpu_custom_call.1} parent=0 // loop_footer
    %s13 = sadd.s32 1, %s9
  $region7: #{tpu_custom_call.1} parent=0 // loop_footer_branch
    %8 = sbr.rel target = $region3
  $region8: #{tpu_custom_call.1} parent=0 // loop_exit
    _

</llo_original>
